<compile_context>
chip_gen: v5e
topology: v5e:2x2
jax: 0.10.0
libtpu: 0.0.40
codegen_flags: <defaults>
</compile_context>

<pallas_src>
import functools

import jax
import jax.numpy as jnp
from jax.experimental import pallas as pl
from jax.experimental.pallas import tpu as pltpu

BN_EPS = 1e-5
P_HID = (64, 64, 32)          # PredicateEncoder hidden dims
F_HID = (64, 32)              # final head hidden dims
W_LANES = 64                  # common lane width of the stacked weight buffer
PV_LANES = 128                # lane width of the packed param-vector buffer


def _round_up(x, m):
    return -(-x // m) * m


def _bn_relu(h, gamma, beta):
    """Training-mode BatchNorm1d (biased var) + ReLU, folded to scale/shift.

    One pass for the statistics (sum / sum-of-squares), then a 2-op apply
    (h * scale + shift) followed by ReLU.  All in f32.
    """
    inv_n = 1.0 / h.shape[0]
    mean = jnp.sum(h, axis=0, keepdims=True) * inv_n
    mean_sq = jnp.sum(h * h, axis=0, keepdims=True) * inv_n
    var = jnp.maximum(mean_sq - mean * mean, 0.0)
    scale = gamma * jax.lax.rsqrt(var + BN_EPS)        # (1, n)
    shift = beta - mean * scale                        # (1, n)
    return jnp.maximum(h * scale + shift, 0.0)


def _make_kernel(B, P, seg_info, w_info):
    inv_p = 1.0 / P

    def kernel(pred_ref, feats_ref, wstack_ref, pvec_ref, out_ref):
        f32, bf16 = jnp.float32, jnp.bfloat16

        def seg(name):                       # lane-0-aligned packed param row
            r, n = seg_info[name]
            return pvec_ref[r:r + 1, 0:n]    # (1, n) f32

        def w(name):                         # tile-aligned static weight slice
            r0, k, n = w_info[name]
            return wstack_ref[r0:r0 + k, 0:n]   # (k, n) bf16

        # ---- PredicateEncoder over (P*B, D_pad) rows (predicate-major) ------
        # Linear biases are dropped: they cancel exactly in training-mode BN.
        h = jnp.dot(pred_ref[...], w("pw1"), preferred_element_type=f32)
        h = _bn_relu(h, seg("pg1"), seg("pbe1"))
        h = jnp.dot(h.astype(bf16), w("pw2"), preferred_element_type=f32)
        h = _bn_relu(h, seg("pg2"), seg("pbe2"))
        h = jnp.dot(h.astype(bf16), w("pw3"), preferred_element_type=f32)
        h = _bn_relu(h, seg("pg3"), seg("pbe3"))          # (P*B, 32) f32

        # ---- mean pool over predicates: P contiguous (B, 32) row blocks -----
        # Interleaved partial accumulators expose ILP for large P.
        n_acc = min(P, 4)
        accs = [h[p * B:(p + 1) * B, :] for p in range(n_acc)]
        for p in range(n_acc, P):
            accs[p % n_acc] = accs[p % n_acc] + h[p * B:(p + 1) * B, :]
        pooled = accs[0]
        for a in accs[1:]:
            pooled = pooled + a
        pooled = pooled * inv_p                           # (B, 32) f32

        # ---- final head: fc1 as two partial matmuls --------------------------
        z = (jnp.dot(feats_ref[...], w("fw1o"), preferred_element_type=f32)
             + jnp.dot(pooled.astype(bf16), w("fw1p"),
                       preferred_element_type=f32))
        z = _bn_relu(z, seg("fg1"), seg("fbe1"))
        z = jnp.dot(z.astype(bf16), w("fw2"), preferred_element_type=f32)
        z = _bn_relu(z, seg("fg2"), seg("fbe2"))          # (B, 32) f32

        # fc3 (out_features = 1): VPU multiply + lane reduce, no N=1 MXU push.
        logit = jnp.sum(z * seg("fw3"), axis=-1, keepdims=True) + seg("fb3")
        out_ref[...] = jax.nn.sigmoid(logit)

    return kernel


def init_params(key, table_id_dim, subtable_id_dim, join_key_dim,
                predicate_input_dim, final_hidden_dims=F_HID):
    """Deterministic synthetic parameters matching the torch module's shapes."""
    hd = P_HID
    in_dim = table_id_dim * 2 + subtable_id_dim * 2 + join_key_dim + 32

    def linear(k, n_in, n_out):
        kw, kb = jax.random.split(k)
        w = jax.random.normal(kw, (n_in, n_out), jnp.float32) * 0.1
        b = jax.random.normal(kb, (n_out,), jnp.float32) * 0.05
        return w, b

    def bn(k, n):
        kg, kb = jax.random.split(k)
        g = 1.0 + 0.1 * jax.random.normal(kg, (n,), jnp.float32)
        b = 0.05 * jax.random.normal(kb, (n,), jnp.float32)
        return g, b

    ks = jax.random.split(key, 11)
    p = {}
    p["pw1"], p["pb1"] = linear(ks[0], predicate_input_dim, hd[0])
    p["pg1"], p["pbe1"] = bn(ks[1], hd[0])
    p["pw2"], p["pb2"] = linear(ks[2], hd[0], hd[1])
    p["pg2"], p["pbe2"] = bn(ks[3], hd[1])
    p["pw3"], p["pb3"] = linear(ks[4], hd[1], hd[2])
    p["pg3"], p["pbe3"] = bn(ks[5], hd[2])

    p["fw1"], p["fb1"] = linear(ks[6], in_dim, final_hidden_dims[0])
    p["fg1"], p["fbe1"] = bn(ks[7], final_hidden_dims[0])
    p["fw2"], p["fb2"] = linear(ks[8], final_hidden_dims[0], final_hidden_dims[1])
    p["fg2"], p["fbe2"] = bn(ks[9], final_hidden_dims[1])
    p["fw3"], p["fb3"] = linear(ks[10], final_hidden_dims[1], 1)
    return p


@functools.partial(jax.jit, static_argnames=("table_id_dim", "subtable_id_dim",
                                              "join_key_dim"))
def cardinality_classifier(params, table_feats, subtable_feats, join_feats,
                           predicate_feats, *, table_id_dim, subtable_id_dim,
                           join_key_dim):
    B, P, D = predicate_feats.shape
    bf16, f32 = jnp.bfloat16, jnp.float32
    h1, h2, h3 = P_HID
    f1, f2 = F_HID

    # Predicate-major flattening: row p*B + b holds predicate p of batch item
    # b.  The encoder is row-permutation equivariant (BN stats span all rows),
    # and this makes the in-kernel mean pool a sum of contiguous row blocks.
    # NOTE: for best performance pick B % 8 == 0 (sublane-aligned pool slices);
    # rows are NOT padded because that would change the training-mode BN stats.
    # TODO(synk): for large P*B*D, avoid this materialized transpose+cast copy
    # (read (B,P,D) directly and pool batch-major) to halve HBM traffic.
    D_pad = _round_up(D, 16)
    pred_flat = jnp.transpose(predicate_feats, (1, 0, 2)).reshape(P * B, D)
    pred_flat = jnp.pad(pred_flat.astype(bf16), ((0, 0), (0, D_pad - D)))

    # Concatenate the non-predicate features once; zero-pad the feature (lane)
    # dim to a 16-multiple so the matching weight slice is tile-aligned.
    n_other = 2 * table_id_dim + 2 * subtable_id_dim + join_key_dim
    n_other_pad = _round_up(n_other, 16)
    other = jnp.concatenate([table_feats, subtable_feats, join_feats],
                            axis=1).astype(bf16)
    other = jnp.pad(other, ((0, 0), (0, n_other_pad - n_other)))

    fw1 = params["fw1"]
    fw1_other = fw1[:n_other]                     # (n_other, 64)
    fw1_pred = fw1[n_other:]                      # (32, 64)

    # ---- Stack all matmul weights into ONE bf16 buffer (sublane-stacked) ----
    # Each weight starts on a 16-row boundary (bf16 tile) and lanes are zero-
    # padded to W_LANES, so every in-kernel slice is a tile-aligned view.
    def pad_block(wt, k_pad):
        k, n = wt.shape
        return jnp.pad(wt.astype(bf16), ((0, k_pad - k), (0, W_LANES - n)))

    w_entries = [  # name, weight, padded K rows, true N cols
        ("pw1", params["pw1"], D_pad, h1),
        ("pw2", params["pw2"], h1, h2),
        ("pw3", params["pw3"], h2, h3),
        ("fw1o", fw1_other, n_other_pad, f1),
        ("fw1p", fw1_pred, h3, f1),
        ("fw2", params["fw2"], f1, f2),
    ]
    w_info, pieces, row = {}, [], 0
    for name, wt, k_pad, n_cols in w_entries:
        w_info[name] = (row, k_pad, n_cols)
        pieces.append(pad_block(wt, k_pad))
        row += k_pad
    wstack = jnp.concatenate(pieces, axis=0)      # (row, W_LANES) bf16

    # ---- Pack every tiny per-feature vector: one lane-0-aligned row each ----
    packed_names = ["pg1", "pbe1", "pg2", "pbe2", "pg3", "pbe3",
                    "fg1", "fbe1", "fg2", "fbe2", "fw3", "fb3"]
    seg_info, rows = {}, []
    for r, name in enumerate(packed_names):
        v = params[name].reshape(-1).astype(f32)
        seg_info[name] = (r, v.shape[0])
        rows.append(jnp.pad(v, (0, PV_LANES - v.shape[0])))
    pvec = jnp.stack(rows)                        # (n_rows, 128) f32

    inputs = [pred_flat, other, wstack, pvec]

    flops = 2 * (P * B * (D_pad * h1 + h1 * h2 + h2 * h3)
                 + B * (n_other_pad * f1 + h3 * f1 + f1 * f2 + f2))
    transcendentals = B + h1 + h2 + h3 + f1 + f2      # sigmoid + BN rsqrt
    bytes_accessed = sum(int(x.size) * x.dtype.itemsize for x in inputs) + B * 4

    kernel = _make_kernel(B, P, seg_info, w_info)
    vmem = pl.BlockSpec(memory_space=pltpu.MemorySpace.VMEM)
    # TODO(synk): when B >= 128, emit a lane-dense (1, B) logit and reshape in
    # the wrapper instead of the masked (B, 1) column store.
    return pl.pallas_call(
        kernel,
        out_shape=jax.ShapeDtypeStruct((B, 1), jnp.float32),
        in_specs=[vmem] * len(inputs),
        out_specs=vmem,
        cost_estimate=pl.CostEstimate(flops=int(flops),
                                      transcendentals=int(transcendentals),
                                      bytes_accessed=int(bytes_accessed)),
        compiler_params=pltpu.CompilerParams(vmem_limit_bytes=32 * 1024 * 1024),
    )(*inputs)


def reference_forward(params, table_feats, subtable_feats, join_feats,
                      predicate_feats, *, matmul_dtype=jnp.float32):
    """Pure-JAX reference replicating the torch forward (training-mode BN).

    matmul_dtype=jnp.bfloat16 mimics the kernel's operand precision (f32 accum);
    matmul_dtype=jnp.float32 is the exact torch math.
    """
    def mm(a, w):
        return jnp.dot(a.astype(matmul_dtype), w.astype(matmul_dtype),
                       preferred_element_type=jnp.float32)

    def bn_relu(h, g, b):
        m = h.mean(0, keepdims=True)
        v = ((h - m) ** 2).mean(0, keepdims=True)
        return jnp.maximum((h - m) * jax.lax.rsqrt(v + BN_EPS) * g + b, 0.0)

    B, P, D = predicate_feats.shape
    x = predicate_feats.reshape(B * P, D)
    x = bn_relu(mm(x, params["pw1"]) + params["pb1"], params["pg1"], params["pbe1"])
    x = bn_relu(mm(x, params["pw2"]) + params["pb2"], params["pg2"], params["pbe2"])
    x = bn_relu(mm(x, params["pw3"]) + params["pb3"], params["pg3"], params["pbe3"])
    pooled = x.reshape(B, P, -1).mean(axis=1)
    z = jnp.concatenate([table_feats, subtable_feats, join_feats, pooled], axis=1)
    z = bn_relu(mm(z, params["fw1"]) + params["fb1"], params["fg1"], params["fbe1"])
    z = bn_relu(mm(z, params["fw2"]) + params["fb2"], params["fg2"], params["fbe2"])
    return jax.nn.sigmoid(mm(z, params["fw3"]) + params["fb3"])


if __name__ == "__main__":
    table_id_dim = 6
    subtable_id_dim = 5
    join_key_dim = 8
    predicate_input_dim = 12
    B, P = 8, 3          # B % 8 == 0 keeps the pooling slices sublane-aligned

    key = jax.random.PRNGKey(0)
    kp, kt, ks, kj, kpr = jax.random.split(key, 5)

    params = init_params(kp, table_id_dim, subtable_id_dim, join_key_dim,
                         predicate_input_dim)

    table_feats = jax.random.normal(kt, (B, 2 * table_id_dim), jnp.float32)
    subtable_feats = jax.random.normal(ks, (B, 2 * subtable_id_dim), jnp.float32)
    join_feats = jax.random.normal(kj, (B, join_key_dim), jnp.float32)
    predicate_feats = jax.random.normal(kpr, (B, P, predicate_input_dim),
                                        jnp.float32)

    out = cardinality_classifier(
        params, table_feats, subtable_feats, join_feats, predicate_feats,
        table_id_dim=table_id_dim, subtable_id_dim=subtable_id_dim,
        join_key_dim=join_key_dim)
    out = jax.block_until_ready(out)
    assert out.shape == (B, 1)

    # Tight check vs. a reference matching the kernel's bf16-operand /
    # f32-accumulate matmul precision, plus a looser sanity check vs. the
    # exact f32 torch math (bf16 operand rounding accounts for the slack).
    ref_bf16 = reference_forward(params, table_feats, subtable_feats,
                                 join_feats, predicate_feats,
                                 matmul_dtype=jnp.bfloat16)
    ref_f32 = reference_forward(params, table_feats, subtable_feats,
                                join_feats, predicate_feats,
                                matmul_dtype=jnp.float32)
    assert jnp.allclose(out, ref_bf16, atol=3e-3, rtol=0.0), (out, ref_bf16)
    assert jnp.allclose(out, ref_f32, atol=5e-2, rtol=0.0), (out, ref_f32)
    print("KERNEL_OK")
</pallas_src>

<mosaic_0001>
module attributes {stable_mosaic.version = 11 : i64} {
  func.func @kernel(%arg0: memref<24x16xbf16, #tpu.memory_space<vmem>>, %arg1: memref<8x32xbf16, #tpu.memory_space<vmem>>, %arg2: memref<272x64xbf16, #tpu.memory_space<vmem>>, %arg3: memref<12x128xf32, #tpu.memory_space<vmem>>, %arg4: memref<8x1xf32, #tpu.memory_space<vmem>>) attributes {dimension_semantics = [], scalar_prefetch = 0 : i64, scratch_operands = 0 : i64, tpu.core_type = #tpu.core_type<tc>} {
    %c0 = arith.constant 0 : index
    %c0_0 = arith.constant 0 : index
    %0 = vector.load %arg0[%c0, %c0_0] : memref<24x16xbf16, #tpu.memory_space<vmem>>, vector<24x16xbf16>
    %c0_1 = arith.constant 0 : index
    %c0_2 = arith.constant 0 : index
    %1 = vector.load %arg2[%c0_1, %c0_2] : memref<272x64xbf16, #tpu.memory_space<vmem>>, vector<16x64xbf16>
    %cst = arith.constant dense<0.000000e+00> : vector<24x64xf32>
    %2 = tpu.matmul %0, %1, %cst {dimension_numbers = #tpu.dot_dimension_numbers<[1], [0], [0], [1], [0, 0, 1, 1], [], []>} : vector<24x16xbf16>, vector<16x64xbf16>, vector<24x64xf32> -> vector<24x64xf32>
    %c0_3 = arith.constant 0 : index
    %c0_4 = arith.constant 0 : index
    %3 = vector.load %arg3[%c0_3, %c0_4] : memref<12x128xf32, #tpu.memory_space<vmem>>, vector<1x64xf32>
    %c1 = arith.constant 1 : index
    %c0_5 = arith.constant 0 : index
    %4 = vector.load %arg3[%c1, %c0_5] : memref<12x128xf32, #tpu.memory_space<vmem>>, vector<1x64xf32>
    %cst_6 = arith.constant dense<0.000000e+00> : vector<64xf32>
    %5 = vector.multi_reduction <add>, %2, %cst_6 [0] : vector<24x64xf32> to vector<64xf32>
    %6 = vector.shape_cast %5 : vector<64xf32> to vector<1x64xf32>
    %cst_7 = arith.constant 0.0416666679 : f32
    %7 = vector.broadcast %cst_7 : f32 to vector<1x64xf32>
    %8 = arith.mulf %6, %7 : vector<1x64xf32>
    %9 = arith.mulf %2, %2 : vector<24x64xf32>
    %cst_8 = arith.constant dense<0.000000e+00> : vector<64xf32>
    %10 = vector.multi_reduction <add>, %9, %cst_8 [0] : vector<24x64xf32> to vector<64xf32>
    %11 = vector.shape_cast %10 : vector<64xf32> to vector<1x64xf32>
    %cst_9 = arith.constant 0.0416666679 : f32
    %12 = vector.broadcast %cst_9 : f32 to vector<1x64xf32>
    %13 = arith.mulf %11, %12 : vector<1x64xf32>
    %14 = arith.mulf %8, %8 : vector<1x64xf32>
    %15 = arith.subf %13, %14 : vector<1x64xf32>
    %cst_10 = arith.constant 0.000000e+00 : f32
    %16 = vector.broadcast %cst_10 : f32 to vector<1x64xf32>
    %17 = arith.maximumf %15, %16 : vector<1x64xf32>
    %cst_11 = arith.constant 9.99999974E-6 : f32
    %18 = vector.broadcast %cst_11 : f32 to vector<1x64xf32>
    %19 = arith.addf %17, %18 : vector<1x64xf32>
    %20 = math.rsqrt %19 : vector<1x64xf32>
    %21 = arith.mulf %3, %20 : vector<1x64xf32>
    %22 = arith.mulf %8, %21 : vector<1x64xf32>
    %23 = arith.subf %4, %22 : vector<1x64xf32>
    %24 = vector.broadcast %21 : vector<1x64xf32> to vector<24x64xf32>
    %25 = arith.mulf %2, %24 : vector<24x64xf32>
    %26 = vector.broadcast %23 : vector<1x64xf32> to vector<24x64xf32>
    %27 = arith.addf %25, %26 : vector<24x64xf32>
    %cst_12 = arith.constant 0.000000e+00 : f32
    %28 = vector.broadcast %cst_12 : f32 to vector<24x64xf32>
    %29 = arith.maximumf %27, %28 : vector<24x64xf32>
    %30 = arith.truncf %29 : vector<24x64xf32> to vector<24x64xbf16>
    %c16 = arith.constant 16 : index
    %c0_13 = arith.constant 0 : index
    %31 = vector.load %arg2[%c16, %c0_13] : memref<272x64xbf16, #tpu.memory_space<vmem>>, vector<64x64xbf16>
    %cst_14 = arith.constant dense<0.000000e+00> : vector<24x64xf32>
    %32 = tpu.matmul %30, %31, %cst_14 {dimension_numbers = #tpu.dot_dimension_numbers<[1], [0], [0], [1], [0, 0, 1, 1], [], []>} : vector<24x64xbf16>, vector<64x64xbf16>, vector<24x64xf32> -> vector<24x64xf32>
    %c2 = arith.constant 2 : index
    %c0_15 = arith.constant 0 : index
    %33 = vector.load %arg3[%c2, %c0_15] : memref<12x128xf32, #tpu.memory_space<vmem>>, vector<1x64xf32>
    %c3 = arith.constant 3 : index
    %c0_16 = arith.constant 0 : index
    %34 = vector.load %arg3[%c3, %c0_16] : memref<12x128xf32, #tpu.memory_space<vmem>>, vector<1x64xf32>
    %cst_17 = arith.constant dense<0.000000e+00> : vector<64xf32>
    %35 = vector.multi_reduction <add>, %32, %cst_17 [0] : vector<24x64xf32> to vector<64xf32>
    %36 = vector.shape_cast %35 : vector<64xf32> to vector<1x64xf32>
    %cst_18 = arith.constant 0.0416666679 : f32
    %37 = vector.broadcast %cst_18 : f32 to vector<1x64xf32>
    %38 = arith.mulf %36, %37 : vector<1x64xf32>
    %39 = arith.mulf %32, %32 : vector<24x64xf32>
    %cst_19 = arith.constant dense<0.000000e+00> : vector<64xf32>
    %40 = vector.multi_reduction <add>, %39, %cst_19 [0] : vector<24x64xf32> to vector<64xf32>
    %41 = vector.shape_cast %40 : vector<64xf32> to vector<1x64xf32>
    %cst_20 = arith.constant 0.0416666679 : f32
    %42 = vector.broadcast %cst_20 : f32 to vector<1x64xf32>
    %43 = arith.mulf %41, %42 : vector<1x64xf32>
    %44 = arith.mulf %38, %38 : vector<1x64xf32>
    %45 = arith.subf %43, %44 : vector<1x64xf32>
    %cst_21 = arith.constant 0.000000e+00 : f32
    %46 = vector.broadcast %cst_21 : f32 to vector<1x64xf32>
    %47 = arith.maximumf %45, %46 : vector<1x64xf32>
    %cst_22 = arith.constant 9.99999974E-6 : f32
    %48 = vector.broadcast %cst_22 : f32 to vector<1x64xf32>
    %49 = arith.addf %47, %48 : vector<1x64xf32>
    %50 = math.rsqrt %49 : vector<1x64xf32>
    %51 = arith.mulf %33, %50 : vector<1x64xf32>
    %52 = arith.mulf %38, %51 : vector<1x64xf32>
    %53 = arith.subf %34, %52 : vector<1x64xf32>
    %54 = vector.broadcast %51 : vector<1x64xf32> to vector<24x64xf32>
    %55 = arith.mulf %32, %54 : vector<24x64xf32>
    %56 = vector.broadcast %53 : vector<1x64xf32> to vector<24x64xf32>
    %57 = arith.addf %55, %56 : vector<24x64xf32>
    %cst_23 = arith.constant 0.000000e+00 : f32
    %58 = vector.broadcast %cst_23 : f32 to vector<24x64xf32>
    %59 = arith.maximumf %57, %58 : vector<24x64xf32>
    %60 = arith.truncf %59 : vector<24x64xf32> to vector<24x64xbf16>
    %c80 = arith.constant 80 : index
    %c0_24 = arith.constant 0 : index
    %61 = vector.load %arg2[%c80, %c0_24] : memref<272x64xbf16, #tpu.memory_space<vmem>>, vector<64x32xbf16>
    %cst_25 = arith.constant dense<0.000000e+00> : vector<24x32xf32>
    %62 = tpu.matmul %60, %61, %cst_25 {dimension_numbers = #tpu.dot_dimension_numbers<[1], [0], [0], [1], [0, 0, 1, 1], [], []>} : vector<24x64xbf16>, vector<64x32xbf16>, vector<24x32xf32> -> vector<24x32xf32>
    %c4 = arith.constant 4 : index
    %c0_26 = arith.constant 0 : index
    %63 = vector.load %arg3[%c4, %c0_26] : memref<12x128xf32, #tpu.memory_space<vmem>>, vector<1x32xf32>
    %c5 = arith.constant 5 : index
    %c0_27 = arith.constant 0 : index
    %64 = vector.load %arg3[%c5, %c0_27] : memref<12x128xf32, #tpu.memory_space<vmem>>, vector<1x32xf32>
    %cst_28 = arith.constant dense<0.000000e+00> : vector<32xf32>
    %65 = vector.multi_reduction <add>, %62, %cst_28 [0] : vector<24x32xf32> to vector<32xf32>
    %66 = vector.shape_cast %65 : vector<32xf32> to vector<1x32xf32>
    %cst_29 = arith.constant 0.0416666679 : f32
    %67 = vector.broadcast %cst_29 : f32 to vector<1x32xf32>
    %68 = arith.mulf %66, %67 : vector<1x32xf32>
    %69 = arith.mulf %62, %62 : vector<24x32xf32>
    %cst_30 = arith.constant dense<0.000000e+00> : vector<32xf32>
    %70 = vector.multi_reduction <add>, %69, %cst_30 [0] : vector<24x32xf32> to vector<32xf32>
    %71 = vector.shape_cast %70 : vector<32xf32> to vector<1x32xf32>
    %cst_31 = arith.constant 0.0416666679 : f32
    %72 = vector.broadcast %cst_31 : f32 to vector<1x32xf32>
    %73 = arith.mulf %71, %72 : vector<1x32xf32>
    %74 = arith.mulf %68, %68 : vector<1x32xf32>
    %75 = arith.subf %73, %74 : vector<1x32xf32>
    %cst_32 = arith.constant 0.000000e+00 : f32
    %76 = vector.broadcast %cst_32 : f32 to vector<1x32xf32>
    %77 = arith.maximumf %75, %76 : vector<1x32xf32>
    %cst_33 = arith.constant 9.99999974E-6 : f32
    %78 = vector.broadcast %cst_33 : f32 to vector<1x32xf32>
    %79 = arith.addf %77, %78 : vector<1x32xf32>
    %80 = math.rsqrt %79 : vector<1x32xf32>
    %81 = arith.mulf %63, %80 : vector<1x32xf32>
    %82 = arith.mulf %68, %81 : vector<1x32xf32>
    %83 = arith.subf %64, %82 : vector<1x32xf32>
    %84 = vector.broadcast %81 : vector<1x32xf32> to vector<24x32xf32>
    %85 = arith.mulf %62, %84 : vector<24x32xf32>
    %86 = vector.broadcast %83 : vector<1x32xf32> to vector<24x32xf32>
    %87 = arith.addf %85, %86 : vector<24x32xf32>
    %cst_34 = arith.constant 0.000000e+00 : f32
    %88 = vector.broadcast %cst_34 : f32 to vector<24x32xf32>
    %89 = arith.maximumf %87, %88 : vector<24x32xf32>
    %90 = vector.extract_strided_slice %89 {offsets = [0, 0], sizes = [8, 32], strides = [1, 1]} : vector<24x32xf32> to vector<8x32xf32>
    %91 = vector.extract_strided_slice %89 {offsets = [8, 0], sizes = [8, 32], strides = [1, 1]} : vector<24x32xf32> to vector<8x32xf32>
    %92 = vector.extract_strided_slice %89 {offsets = [16, 0], sizes = [8, 32], strides = [1, 1]} : vector<24x32xf32> to vector<8x32xf32>
    %93 = arith.addf %90, %91 : vector<8x32xf32>
    %94 = arith.addf %93, %92 : vector<8x32xf32>
    %cst_35 = arith.constant 0.333333343 : f32
    %95 = vector.broadcast %cst_35 : f32 to vector<8x32xf32>
    %96 = arith.mulf %94, %95 : vector<8x32xf32>
    %c0_36 = arith.constant 0 : index
    %c0_37 = arith.constant 0 : index
    %97 = vector.load %arg1[%c0_36, %c0_37] : memref<8x32xbf16, #tpu.memory_space<vmem>>, vector<8x32xbf16>
    %c144 = arith.constant 144 : index
    %c0_38 = arith.constant 0 : index
    %98 = vector.load %arg2[%c144, %c0_38] : memref<272x64xbf16, #tpu.memory_space<vmem>>, vector<32x64xbf16>
    %cst_39 = arith.constant dense<0.000000e+00> : vector<8x64xf32>
    %99 = tpu.matmul %97, %98, %cst_39 {dimension_numbers = #tpu.dot_dimension_numbers<[1], [0], [0], [1], [0, 0, 1, 1], [], []>} : vector<8x32xbf16>, vector<32x64xbf16>, vector<8x64xf32> -> vector<8x64xf32>
    %100 = arith.truncf %96 : vector<8x32xf32> to vector<8x32xbf16>
    %c176 = arith.constant 176 : index
    %c0_40 = arith.constant 0 : index
    %101 = vector.load %arg2[%c176, %c0_40] : memref<272x64xbf16, #tpu.memory_space<vmem>>, vector<32x64xbf16>
    %cst_41 = arith.constant dense<0.000000e+00> : vector<8x64xf32>
    %102 = tpu.matmul %100, %101, %cst_41 {dimension_numbers = #tpu.dot_dimension_numbers<[1], [0], [0], [1], [0, 0, 1, 1], [], []>} : vector<8x32xbf16>, vector<32x64xbf16>, vector<8x64xf32> -> vector<8x64xf32>
    %103 = arith.addf %99, %102 : vector<8x64xf32>
    %c6 = arith.constant 6 : index
    %c0_42 = arith.constant 0 : index
    %104 = vector.load %arg3[%c6, %c0_42] : memref<12x128xf32, #tpu.memory_space<vmem>>, vector<1x64xf32>
    %c7 = arith.constant 7 : index
    %c0_43 = arith.constant 0 : index
    %105 = vector.load %arg3[%c7, %c0_43] : memref<12x128xf32, #tpu.memory_space<vmem>>, vector<1x64xf32>
    %cst_44 = arith.constant dense<0.000000e+00> : vector<64xf32>
    %106 = vector.multi_reduction <add>, %103, %cst_44 [0] : vector<8x64xf32> to vector<64xf32>
    %107 = vector.shape_cast %106 : vector<64xf32> to vector<1x64xf32>
    %cst_45 = arith.constant 1.250000e-01 : f32
    %108 = vector.broadcast %cst_45 : f32 to vector<1x64xf32>
    %109 = arith.mulf %107, %108 : vector<1x64xf32>
    %110 = arith.mulf %103, %103 : vector<8x64xf32>
    %cst_46 = arith.constant dense<0.000000e+00> : vector<64xf32>
    %111 = vector.multi_reduction <add>, %110, %cst_46 [0] : vector<8x64xf32> to vector<64xf32>
    %112 = vector.shape_cast %111 : vector<64xf32> to vector<1x64xf32>
    %cst_47 = arith.constant 1.250000e-01 : f32
    %113 = vector.broadcast %cst_47 : f32 to vector<1x64xf32>
    %114 = arith.mulf %112, %113 : vector<1x64xf32>
    %115 = arith.mulf %109, %109 : vector<1x64xf32>
    %116 = arith.subf %114, %115 : vector<1x64xf32>
    %cst_48 = arith.constant 0.000000e+00 : f32
    %117 = vector.broadcast %cst_48 : f32 to vector<1x64xf32>
    %118 = arith.maximumf %116, %117 : vector<1x64xf32>
    %cst_49 = arith.constant 9.99999974E-6 : f32
    %119 = vector.broadcast %cst_49 : f32 to vector<1x64xf32>
    %120 = arith.addf %118, %119 : vector<1x64xf32>
    %121 = math.rsqrt %120 : vector<1x64xf32>
    %122 = arith.mulf %104, %121 : vector<1x64xf32>
    %123 = arith.mulf %109, %122 : vector<1x64xf32>
    %124 = arith.subf %105, %123 : vector<1x64xf32>
    %125 = vector.broadcast %122 : vector<1x64xf32> to vector<8x64xf32>
    %126 = arith.mulf %103, %125 : vector<8x64xf32>
    %127 = vector.broadcast %124 : vector<1x64xf32> to vector<8x64xf32>
    %128 = arith.addf %126, %127 : vector<8x64xf32>
    %cst_50 = arith.constant 0.000000e+00 : f32
    %129 = vector.broadcast %cst_50 : f32 to vector<8x64xf32>
    %130 = arith.maximumf %128, %129 : vector<8x64xf32>
    %131 = arith.truncf %130 : vector<8x64xf32> to vector<8x64xbf16>
    %c208 = arith.constant 208 : index
    %c0_51 = arith.constant 0 : index
    %132 = vector.load %arg2[%c208, %c0_51] : memref<272x64xbf16, #tpu.memory_space<vmem>>, vector<64x32xbf16>
    %cst_52 = arith.constant dense<0.000000e+00> : vector<8x32xf32>
    %133 = tpu.matmul %131, %132, %cst_52 {dimension_numbers = #tpu.dot_dimension_numbers<[1], [0], [0], [1], [0, 0, 1, 1], [], []>} : vector<8x64xbf16>, vector<64x32xbf16>, vector<8x32xf32> -> vector<8x32xf32>
    %c8 = arith.constant 8 : index
    %c0_53 = arith.constant 0 : index
    %134 = vector.load %arg3[%c8, %c0_53] : memref<12x128xf32, #tpu.memory_space<vmem>>, vector<1x32xf32>
    %c9 = arith.constant 9 : index
    %c0_54 = arith.constant 0 : index
    %135 = vector.load %arg3[%c9, %c0_54] : memref<12x128xf32, #tpu.memory_space<vmem>>, vector<1x32xf32>
    %cst_55 = arith.constant dense<0.000000e+00> : vector<32xf32>
    %136 = vector.multi_reduction <add>, %133, %cst_55 [0] : vector<8x32xf32> to vector<32xf32>
    %137 = vector.shape_cast %136 : vector<32xf32> to vector<1x32xf32>
    %cst_56 = arith.constant 1.250000e-01 : f32
    %138 = vector.broadcast %cst_56 : f32 to vector<1x32xf32>
    %139 = arith.mulf %137, %138 : vector<1x32xf32>
    %140 = arith.mulf %133, %133 : vector<8x32xf32>
    %cst_57 = arith.constant dense<0.000000e+00> : vector<32xf32>
    %141 = vector.multi_reduction <add>, %140, %cst_57 [0] : vector<8x32xf32> to vector<32xf32>
    %142 = vector.shape_cast %141 : vector<32xf32> to vector<1x32xf32>
    %cst_58 = arith.constant 1.250000e-01 : f32
    %143 = vector.broadcast %cst_58 : f32 to vector<1x32xf32>
    %144 = arith.mulf %142, %143 : vector<1x32xf32>
    %145 = arith.mulf %139, %139 : vector<1x32xf32>
    %146 = arith.subf %144, %145 : vector<1x32xf32>
    %cst_59 = arith.constant 0.000000e+00 : f32
    %147 = vector.broadcast %cst_59 : f32 to vector<1x32xf32>
    %148 = arith.maximumf %146, %147 : vector<1x32xf32>
    %cst_60 = arith.constant 9.99999974E-6 : f32
    %149 = vector.broadcast %cst_60 : f32 to vector<1x32xf32>
    %150 = arith.addf %148, %149 : vector<1x32xf32>
    %151 = math.rsqrt %150 : vector<1x32xf32>
    %152 = arith.mulf %134, %151 : vector<1x32xf32>
    %153 = arith.mulf %139, %152 : vector<1x32xf32>
    %154 = arith.subf %135, %153 : vector<1x32xf32>
    %155 = vector.broadcast %152 : vector<1x32xf32> to vector<8x32xf32>
    %156 = arith.mulf %133, %155 : vector<8x32xf32>
    %157 = vector.broadcast %154 : vector<1x32xf32> to vector<8x32xf32>
    %158 = arith.addf %156, %157 : vector<8x32xf32>
    %cst_61 = arith.constant 0.000000e+00 : f32
    %159 = vector.broadcast %cst_61 : f32 to vector<8x32xf32>
    %160 = arith.maximumf %158, %159 : vector<8x32xf32>
    %c10 = arith.constant 10 : index
    %c0_62 = arith.constant 0 : index
    %161 = vector.load %arg3[%c10, %c0_62] : memref<12x128xf32, #tpu.memory_space<vmem>>, vector<1x32xf32>
    %162 = vector.broadcast %161 : vector<1x32xf32> to vector<8x32xf32>
    %163 = arith.mulf %160, %162 : vector<8x32xf32>
    %cst_63 = arith.constant dense<0.000000e+00> : vector<8xf32>
    %164 = vector.multi_reduction <add>, %163, %cst_63 [1] : vector<8x32xf32> to vector<8xf32>
    %165 = vector.shape_cast %164 : vector<8xf32> to vector<8x1xf32>
    %c11 = arith.constant 11 : index
    %c0_64 = arith.constant 0 : index
    %166 = vector.load %arg3[%c11, %c0_64] : memref<12x128xf32, #tpu.memory_space<vmem>>, vector<1x1xf32>
    %167 = vector.broadcast %166 : vector<1x1xf32> to vector<8x1xf32>
    %168 = arith.addf %165, %167 : vector<8x1xf32>
    %169 = arith.negf %168 : vector<8x1xf32>
    %170 = math.exp %169 : vector<8x1xf32>
    %cst_65 = arith.constant 1.000000e+00 : f32
    %171 = vector.broadcast %cst_65 : f32 to vector<8x1xf32>
    %172 = arith.addf %171, %170 : vector<8x1xf32>
    %173 = arith.divf %171, %172 : vector<8x1xf32>
    %c0_66 = arith.constant 0 : index
    %c0_67 = arith.constant 0 : index
    %174 = vector.load %arg4[%c0_66, %c0_67] : memref<8x1xf32, #tpu.memory_space<vmem>>, vector<8x1xf32>
    tpu.vector_store %arg4[%c0_66, %c0_67], %173 {strides = array<i32>} : memref<8x1xf32, #tpu.memory_space<vmem>>, vector<8x1xf32>,
    return
  }
}

</mosaic_0001>

<llo_original>
// kernel: cardinality_classifier.1
$region0: #{cardinality_classifier.1}
  #allocation0 [shape = 'u32[]', space=smem, size = 0x4, offset = 0x4, fixed_abs, tag = 'smem constant byte address 0x4 - core index']
  #allocation1 [shape = 'u32[72,128]{1,0:T(1,128)}', space=vmem, size = 0x9000, scoped, tag = 'internal scratch']
  %s0 = inlined_call_operand.vmem [shape: bf16[24,16], index: 0, kind: input, shape index: {}]
  %s1 = inlined_call_operand.vmem [shape: bf16[8,32], index: 1, kind: input, shape index: {}]
  %s2 = inlined_call_operand.vmem [shape: bf16[272,64], index: 2, kind: input, shape index: {}]
  %s3 = inlined_call_operand.vmem [shape: f32[12,128], index: 3, kind: input, shape index: {}]
  %s4 = inlined_call_operand.vmem [shape: f32[8,1], index: 4, kind: output, shape index: {}]
  %s5 = sld [smem:[#allocation0]]
  $region26: #{cardinality_classifier.1} parent=0
    _
  %s7 = ssub.s32 1, %s5
  %s8 = scalar_select 0, %s7, %s5
  // Predicated region
  $region2: #{cardinality_classifier.1} parent=0 // pred_check
    _
  $region3: #{cardinality_classifier.1} parent=0 // pred_check_branch
    %10 = sbr.rel (0) target = $region5
  $region4: #{cardinality_classifier.1} parent=0 // pred_region
    _
  $region5: #{cardinality_classifier.1} parent=0 // pred_fallthru
    _
  // Predicated region
  $region6: #{cardinality_classifier.1} parent=0 // pred_check
    _
  $region7: #{cardinality_classifier.1} parent=0 // pred_check_branch
    %12 = sbr.rel (0) target = $region9
  $region8: #{cardinality_classifier.1} parent=0 // pred_region
    _
  $region9: #{cardinality_classifier.1} parent=0 // pred_fallthru
    _
  // Predicated region
  $region10: #{cardinality_classifier.1} parent=0 // pred_check
    _
  $region11: #{cardinality_classifier.1} parent=0 // pred_check_branch
    %14 = sbr.rel (0) target = $region13
  $region12: #{cardinality_classifier.1} parent=0 // pred_region
    _
  $region13: #{cardinality_classifier.1} parent=0 // pred_fallthru
    _
  // Predicated region
  $region14: #{cardinality_classifier.1} parent=0 // pred_check
    _
  $region15: #{cardinality_classifier.1} parent=0 // pred_check_branch
    %16 = sbr.rel (0) target = $region17
  $region16: #{cardinality_classifier.1} parent=0 // pred_region
    _
  $region17: #{cardinality_classifier.1} parent=0 // pred_fallthru
    _
  %v18 = vld [vmem:[%s0] sm:$0xf]
  %v19 = vld [vmem:[%s0 + $0x4] sm:$0xf]
  %v20 = vld [vmem:[%s0 + $0x8] sm:$0xf]
  %v21 = vld [vmem:[%s2] sm:$0xf]
  %v22 = vld [vmem:[%s2 + $0x4] sm:$0xf]
  %v26 = vunpack.c.l.b16 %v18
  %v27 = vunpack.c.l.b16 %v19
  %v28 = vunpack.c.l.b16 %v20
  %v29 = vpack.c.b16 %v27, %v26
  %v30 = vpack.c.b16 %v28, %v28
  %v33 = vunpack.c.l.b16 %v21
  %v34 = vunpack.c.l.b16 %v22
  %v35 = vpack.c.b16 %v34, %v33
  %vm37 = vcmask 130048
  %v39 = vsel %vm37, %v29, 0
  %v42 = vsel %vm37, %v30, 0
  %44 = vmatpush.bf16.msra.mxu0 0
  %45 = vmatpush.bf16.msra.mxu0 0
  %46 = vmatpush.bf16.msra.mxu0 0
  %47 = vmatpush.bf16.msra.mxu0 0
  %48 = vmatpush.bf16.msra.mxu0 0
  %49 = vmatpush.bf16.msra.mxu0 0
  %50 = vmatpush.bf16.msra.mxu0 0
  %51 = vmatpush.bf16.msra.mxu0 %v35
  %52 = vmatmul.bf16.gmra.mxu0 %v39
  %v53 = vpop.f32.mrf.mxu0
  %v54 = vadd.f32 0.0, %v53
  %v55 = vpop.f32.mrf.mxu0
  %v56 = vadd.f32 0.0, %v55
  %57 = vmatmul.bf16.gmra.mxu0 %v42
  %v58 = vpop.f32.mrf.mxu0
  %v59 = vadd.f32 0.0, %v58
  %v60 = vpop.f32.mrf.mxu0
  %61 = vdwg.mxu0
  %v62 = vld [vmem:[%s3] sm:$0x1]
  %v63 = vld [vmem:[%s3 + $0x1] sm:$0x1]
  %vm64 = vcmask 523264
  %v65 = vsel %vm64, %v54, 0.0
  %v66 = vsel %vm64, %v56, 0.0
  %v67 = vadd.f32 %v65, %v66
  %v68 = vsel %vm64, %v59, 0.0
  %v69 = vadd.f32 %v67, %v68
  %v70 = vrot.slane %v69, 4
  %v71 = vadd.f32 %v69, %v70
  %v72 = vrot.slane %v71, 2
  %v73 = vadd.f32 %v71, %v72
  %v74 = vrot.slane %v73, 1
  %v75 = vadd.f32 %v73, %v74
  %v76 = vmul.f32 %v75, 0.041666668
  %v77 = vmul.f32 %v54, %v54
  %v78 = vmul.f32 %v56, %v56
  %v79 = vmul.f32 %v59, %v59
  %v80 = vsel %vm64, %v77, 0.0
  %v81 = vsel %vm64, %v78, 0.0
  %v82 = vadd.f32 %v80, %v81
  %v83 = vsel %vm64, %v79, 0.0
  %v84 = vadd.f32 %v82, %v83
  %v85 = vrot.slane %v84, 4
  %v86 = vadd.f32 %v84, %v85
  %v87 = vrot.slane %v86, 2
  %v88 = vadd.f32 %v86, %v87
  %v89 = vrot.slane %v88, 1
  %v90 = vadd.f32 %v88, %v89
  %v91 = vmul.f32 %v90, 0.041666668
  %v92 = vmul.f32 %v76, %v76
  %v93 = vsub.f32 %v91, %v92
  %v94 = vmax.f32 %v93, 0.0
  %v95 = vadd.f32 %v94, 1e-05
  %v96 = vrsqrt.pop %v95
  %v97 = vmul.f32 %v96, %v95
  %v98 = vmul.f32 %v97, %v96
  %v99 = vmul.f32 0.5, %v98
  %v100 = vsub.f32 1.5, %v99
  %v101 = vmul.f32 %v96, %v100
  %vm102 = vweird.f32 %v95
  %vm103 = vweird.f32 %v96
  %vm104 = vmor %vm102, %vm103
  %v105 = vsel %vm104, %v96, %v101
  %v106 = vmul.f32 %v62, %v105
  %v107 = vmul.f32 %v76, %v106
  %v108 = vsub.f32 %v63, %v107
  %v109 = vperm.slane %v106, 0
  %v110 = vmul.f32 %v54, %v109
  %v111 = vmul.f32 %v56, %v109
  %v112 = vmul.f32 %v59, %v109
  %v113 = vperm.slane %v108, 0
  %v114 = vadd.f32 %v110, %v113
  %v115 = vadd.f32 %v111, %v113
  %v116 = vadd.f32 %v112, %v113
  %v117 = vmax.f32 %v114, 0.0
  %v118 = vmax.f32 %v115, 0.0
  %v119 = vmax.f32 %v116, 0.0
  %v120 = vpack.c.bf16 %v118, %v117
  %v121 = vpack.c.bf16 %v119, %v119
  %v122 = vld [vmem:[%s2 + $0x8] sm:$0xf]
  %v123 = vld [vmem:[%s2 + $0xc] sm:$0xf]
  %v124 = vld [vmem:[%s2 + $0x10] sm:$0xf]
  %v125 = vld [vmem:[%s2 + $0x14] sm:$0xf]
  %v126 = vld [vmem:[%s2 + $0x18] sm:$0xf]
  %v127 = vld [vmem:[%s2 + $0x1c] sm:$0xf]
  %v128 = vld [vmem:[%s2 + $0x20] sm:$0xf]
  %v129 = vld [vmem:[%s2 + $0x24] sm:$0xf]
  %v138 = vunpack.c.l.b16 %v122
  %v139 = vunpack.c.l.b16 %v123
  %v140 = vunpack.c.l.b16 %v124
  %v141 = vunpack.c.l.b16 %v125
  %v142 = vunpack.c.l.b16 %v126
  %v143 = vunpack.c.l.b16 %v127
  %v144 = vunpack.c.l.b16 %v128
  %v145 = vunpack.c.l.b16 %v129
  %v146 = vpack.c.b16 %v139, %v138
  %v147 = vpack.c.b16 %v141, %v140
  %v148 = vpack.c.b16 %v143, %v142
  %v149 = vpack.c.b16 %v145, %v144
  %v155 = vsel %vm64, %v120, 0
  %v158 = vsel %vm64, %v121, 0
  %160 = vmatpush.bf16.msra.mxu0 0
  %161 = vmatpush.bf16.msra.mxu0 0
  %162 = vmatpush.bf16.msra.mxu0 0
  %163 = vmatpush.bf16.msra.mxu0 0
  %164 = vmatpush.bf16.msra.mxu0 %v149
  %165 = vmatpush.bf16.msra.mxu0 %v148
  %166 = vmatpush.bf16.msra.mxu0 %v147
  %167 = vmatpush.bf16.msra.mxu0 %v146
  %168 = vmatmul.bf16.gmra.mxu0 %v155
  %v169 = vpop.f32.mrf.mxu0
  %v170 = vadd.f32 0.0, %v169
  %v171 = vpop.f32.mrf.mxu0
  %v172 = vadd.f32 0.0, %v171
  %173 = vmatmul.bf16.gmra.mxu0 %v158
  %v174 = vpop.f32.mrf.mxu0
  %v175 = vadd.f32 0.0, %v174
  %v176 = vpop.f32.mrf.mxu0
  %177 = vdwg.mxu0
  %v178 = vld [vmem:[%s3 + $0x2] sm:$0x1]
  %v179 = vld [vmem:[%s3 + $0x3] sm:$0x1]
  %v180 = vsel %vm64, %v170, 0.0
  %v181 = vsel %vm64, %v172, 0.0
  %v182 = vadd.f32 %v180, %v181
  %v183 = vsel %vm64, %v175, 0.0
  %v184 = vadd.f32 %v182, %v183
  %v185 = vrot.slane %v184, 4
  %v186 = vadd.f32 %v184, %v185
  %v187 = vrot.slane %v186, 2
  %v188 = vadd.f32 %v186, %v187
  %v189 = vrot.slane %v188, 1
  %v190 = vadd.f32 %v188, %v189
  %v191 = vmul.f32 %v190, 0.041666668
  %v192 = vmul.f32 %v170, %v170
  %v193 = vmul.f32 %v172, %v172
  %v194 = vmul.f32 %v175, %v175
  %v195 = vsel %vm64, %v192, 0.0
  %v196 = vsel %vm64, %v193, 0.0
  %v197 = vadd.f32 %v195, %v196
  %v198 = vsel %vm64, %v194, 0.0
  %v199 = vadd.f32 %v197, %v198
  %v200 = vrot.slane %v199, 4
  %v201 = vadd.f32 %v199, %v200
  %v202 = vrot.slane %v201, 2
  %v203 = vadd.f32 %v201, %v202
  %v204 = vrot.slane %v203, 1
  %v205 = vadd.f32 %v203, %v204
  %v206 = vmul.f32 %v205, 0.041666668
  %v207 = vmul.f32 %v191, %v191
  %v208 = vsub.f32 %v206, %v207
  %v209 = vmax.f32 %v208, 0.0
  %v210 = vadd.f32 %v209, 1e-05
  %v211 = vrsqrt.pop %v210
  %v212 = vmul.f32 %v211, %v210
  %v213 = vmul.f32 %v212, %v211
  %v214 = vmul.f32 0.5, %v213
  %v215 = vsub.f32 1.5, %v214
  %v216 = vmul.f32 %v211, %v215
  %vm217 = vweird.f32 %v210
  %vm218 = vweird.f32 %v211
  %vm219 = vmor %vm217, %vm218
  %v220 = vsel %vm219, %v211, %v216
  %v221 = vmul.f32 %v178, %v220
  %v222 = vmul.f32 %v191, %v221
  %v223 = vsub.f32 %v179, %v222
  %v224 = vperm.slane %v221, 0
  %v225 = vmul.f32 %v170, %v224
  %v226 = vmul.f32 %v172, %v224
  %v227 = vmul.f32 %v175, %v224
  %v228 = vperm.slane %v223, 0
  %v229 = vadd.f32 %v225, %v228
  %v230 = vadd.f32 %v226, %v228
  %v231 = vadd.f32 %v227, %v228
  %v232 = vmax.f32 %v229, 0.0
  %v233 = vmax.f32 %v230, 0.0
  %v234 = vmax.f32 %v231, 0.0
  %v235 = vpack.c.bf16 %v233, %v232
  %v236 = vpack.c.bf16 %v234, %v234
  %v237 = vld [vmem:[%s2 + $0x28] sm:$0xf]
  %v238 = vld [vmem:[%s2 + $0x2c] sm:$0xf]
  %v239 = vld [vmem:[%s2 + $0x30] sm:$0xf]
  %v240 = vld [vmem:[%s2 + $0x34] sm:$0xf]
  %v241 = vld [vmem:[%s2 + $0x38] sm:$0xf]
  %v242 = vld [vmem:[%s2 + $0x3c] sm:$0xf]
  %v243 = vld [vmem:[%s2 + $0x40] sm:$0xf]
  %v244 = vld [vmem:[%s2 + $0x44] sm:$0xf]
  %v253 = vunpack.c.l.b16 %v237
  %v254 = vunpack.c.l.b16 %v238
  %v255 = vunpack.c.l.b16 %v239
  %v256 = vunpack.c.l.b16 %v240
  %v257 = vunpack.c.l.b16 %v241
  %v258 = vunpack.c.l.b16 %v242
  %v259 = vunpack.c.l.b16 %v243
  %v260 = vunpack.c.l.b16 %v244
  %v261 = vpack.c.b16 %v254, %v253
  %v262 = vpack.c.b16 %v256, %v255
  %v263 = vpack.c.b16 %v258, %v257
  %v264 = vpack.c.b16 %v260, %v259
  %v270 = vsel %vm64, %v235, 0
  %v273 = vsel %vm64, %v236, 0
  %275 = vmatpush.bf16.msra.mxu0 0
  %276 = vmatpush.bf16.msra.mxu0 0
  %277 = vmatpush.bf16.msra.mxu0 0
  %278 = vmatpush.bf16.msra.mxu0 0
  %279 = vmatpush.bf16.msra.mxu0 %v264
  %280 = vmatpush.bf16.msra.mxu0 %v263
  %281 = vmatpush.bf16.msra.mxu0 %v262
  %282 = vmatpush.bf16.msra.mxu0 %v261
  %283 = vmatmul.bf16.gmra.mxu0 %v270
  %v284 = vpop.f32.mrf.mxu0
  %v285 = vadd.f32 0.0, %v284
  %v286 = vpop.f32.mrf.mxu0
  %v287 = vadd.f32 0.0, %v286
  %288 = vmatmul.bf16.gmra.mxu0 %v273
  %v289 = vpop.f32.mrf.mxu0
  %v290 = vadd.f32 0.0, %v289
  %v291 = vpop.f32.mrf.mxu0
  %292 = vdwg.mxu0
  %v293 = vld [vmem:[%s3 + $0x4] sm:$0x1]
  %v294 = vld [vmem:[%s3 + $0x5] sm:$0x1]
  %vm295 = vcmask 261120
  %v296 = vsel %vm295, %v285, 0.0
  %v297 = vsel %vm295, %v287, 0.0
  %v298 = vadd.f32 %v296, %v297
  %v299 = vsel %vm295, %v290, 0.0
  %v300 = vadd.f32 %v298, %v299
  %v301 = vrot.slane %v300, 4
  %v302 = vadd.f32 %v300, %v301
  %v303 = vrot.slane %v302, 2
  %v304 = vadd.f32 %v302, %v303
  %v305 = vrot.slane %v304, 1
  %v306 = vadd.f32 %v304, %v305
  %v307 = vmul.f32 %v306, 0.041666668
  %v308 = vmul.f32 %v285, %v285
  %v309 = vmul.f32 %v287, %v287
  %v310 = vmul.f32 %v290, %v290
  %v311 = vsel %vm295, %v308, 0.0
  %v312 = vsel %vm295, %v309, 0.0
  %v313 = vadd.f32 %v311, %v312
  %v314 = vsel %vm295, %v310, 0.0
  %v315 = vadd.f32 %v313, %v314
  %v316 = vrot.slane %v315, 4
  %v317 = vadd.f32 %v315, %v316
  %v318 = vrot.slane %v317, 2
  %v319 = vadd.f32 %v317, %v318
  %v320 = vrot.slane %v319, 1
  %v321 = vadd.f32 %v319, %v320
  %v322 = vmul.f32 %v321, 0.041666668
  %v323 = vmul.f32 %v307, %v307
  %v324 = vsub.f32 %v322, %v323
  %v325 = vmax.f32 %v324, 0.0
  %v326 = vadd.f32 %v325, 1e-05
  %v327 = vrsqrt.pop %v326
  %v328 = vmul.f32 %v327, %v326
  %v329 = vmul.f32 %v328, %v327
  %v330 = vmul.f32 0.5, %v329
  %v331 = vsub.f32 1.5, %v330
  %v332 = vmul.f32 %v327, %v331
  %vm333 = vweird.f32 %v326
  %vm334 = vweird.f32 %v327
  %vm335 = vmor %vm333, %vm334
  %v336 = vsel %vm335, %v327, %v332
  %v337 = vmul.f32 %v293, %v336
  %v338 = vmul.f32 %v307, %v337
  %v339 = vsub.f32 %v294, %v338
  %v340 = vperm.slane %v337, 0
  %v341 = vmul.f32 %v285, %v340
  %v342 = vmul.f32 %v287, %v340
  %v343 = vmul.f32 %v290, %v340
  %v344 = vperm.slane %v339, 0
  %v345 = vadd.f32 %v341, %v344
  %v346 = vadd.f32 %v342, %v344
  %v347 = vadd.f32 %v343, %v344
  %v348 = vmax.f32 %v345, 0.0
  %v349 = vmax.f32 %v346, 0.0
  %v350 = vmax.f32 %v347, 0.0
  %v351 = vadd.f32 %v348, %v349
  %v352 = vadd.f32 %v351, %v350
  %v353 = vmul.f32 %v352, 0.33333334
  %v354 = vld [vmem:[%s1] sm:$0xf]
  %v355 = vld [vmem:[%s2 + $0x48] sm:$0xf]
  %v356 = vld [vmem:[%s2 + $0x4c] sm:$0xf]
  %v357 = vld [vmem:[%s2 + $0x50] sm:$0xf]
  %v358 = vld [vmem:[%s2 + $0x54] sm:$0xf]
  %v359 = vpack.c.bf16 %v353, %v353
  %v360 = vld [vmem:[%s2 + $0x58] sm:$0xf]
  %v361 = vld [vmem:[%s2 + $0x5c] sm:$0xf]
  %v362 = vld [vmem:[%s2 + $0x60] sm:$0xf]
  %v363 = vld [vmem:[%s2 + $0x64] sm:$0xf]
  %v368 = vunpack.c.l.b16 %v360
  %v369 = vunpack.c.l.b16 %v361
  %v370 = vunpack.c.l.b16 %v362
  %v371 = vunpack.c.l.b16 %v363
  %v372 = vpack.c.b16 %v369, %v368
  %v373 = vpack.c.b16 %v371, %v370
  %v377 = vsel %vm295, %v359, 0
  %379 = vmatpush.bf16.msra.mxu0 0
  %380 = vmatpush.bf16.msra.mxu0 0
  %381 = vmatpush.bf16.msra.mxu0 0
  %382 = vmatpush.bf16.msra.mxu0 0
  %383 = vmatpush.bf16.msra.mxu0 0
  %384 = vmatpush.bf16.msra.mxu0 0
  %385 = vmatpush.bf16.msra.mxu0 %v373
  %386 = vmatpush.bf16.msra.mxu0 %v372
  %387 = vmatmul.bf16.gmra.mxu0 %v377
  %v388 = vpop.f32.mrf.mxu0
  %v389 = vadd.f32 0.0, %v388
  %v390 = vpop.f32.mrf.mxu0
  %391 = vdwg.mxu0
  %v396 = vunpack.c.l.b16 %v355
  %v397 = vunpack.c.l.b16 %v356
  %v398 = vunpack.c.l.b16 %v357
  %v399 = vunpack.c.l.b16 %v358
  %v400 = vpack.c.b16 %v397, %v396
  %v401 = vpack.c.b16 %v399, %v398
  %v405 = vsel %vm295, %v354, 0
  %407 = vmatpush.bf16.msra.mxu0 0
  %408 = vmatpush.bf16.msra.mxu0 0
  %409 = vmatpush.bf16.msra.mxu0 0
  %410 = vmatpush.bf16.msra.mxu0 0
  %411 = vmatpush.bf16.msra.mxu0 0
  %412 = vmatpush.bf16.msra.mxu0 0
  %413 = vmatpush.bf16.msra.mxu0 %v401
  %414 = vmatpush.bf16.msra.mxu0 %v400
  %415 = vmatmul.bf16.gmra.mxu0 %v405
  %v416 = vpop.f32.mrf.mxu0
  %v417 = vadd.f32 %v389, %v416
  %v418 = vpop.f32.mrf.mxu0
  %419 = vdwg.mxu0
  %v420 = vld [vmem:[%s3 + $0x6] sm:$0x1]
  %v421 = vld [vmem:[%s3 + $0x7] sm:$0x1]
  %v422 = vsel %vm64, %v417, 0.0
  %v423 = vrot.slane %v422, 4
  %v424 = vadd.f32 %v422, %v423
  %v425 = vrot.slane %v424, 2
  %v426 = vadd.f32 %v424, %v425
  %v427 = vrot.slane %v426, 1
  %v428 = vadd.f32 %v426, %v427
  %v429 = vmul.f32 %v428, 0.125
  %v430 = vmul.f32 %v417, %v417
  %v431 = vsel %vm64, %v430, 0.0
  %v432 = vrot.slane %v431, 4
  %v433 = vadd.f32 %v431, %v432
  %v434 = vrot.slane %v433, 2
  %v435 = vadd.f32 %v433, %v434
  %v436 = vrot.slane %v435, 1
  %v437 = vadd.f32 %v435, %v436
  %v438 = vmul.f32 %v437, 0.125
  %v439 = vmul.f32 %v429, %v429
  %v440 = vsub.f32 %v438, %v439
  %v441 = vmax.f32 %v440, 0.0
  %v442 = vadd.f32 %v441, 1e-05
  %v443 = vrsqrt.pop %v442
  %v444 = vmul.f32 %v443, %v442
  %v445 = vmul.f32 %v444, %v443
  %v446 = vmul.f32 0.5, %v445
  %v447 = vsub.f32 1.5, %v446
  %v448 = vmul.f32 %v443, %v447
  %vm449 = vweird.f32 %v442
  %vm450 = vweird.f32 %v443
  %vm451 = vmor %vm449, %vm450
  %v452 = vsel %vm451, %v443, %v448
  %v453 = vmul.f32 %v420, %v452
  %v454 = vmul.f32 %v429, %v453
  %v455 = vsub.f32 %v421, %v454
  %v456 = vperm.slane %v453, 0
  %v457 = vmul.f32 %v417, %v456
  %v458 = vperm.slane %v455, 0
  %v459 = vadd.f32 %v457, %v458
  %v460 = vmax.f32 %v459, 0.0
  %v461 = vpack.c.bf16 %v460, %v460
  %v462 = vld [vmem:[%s2 + $0x68] sm:$0xf]
  %v463 = vld [vmem:[%s2 + $0x6c] sm:$0xf]
  %v464 = vld [vmem:[%s2 + $0x70] sm:$0xf]
  %v465 = vld [vmem:[%s2 + $0x74] sm:$0xf]
  %v466 = vld [vmem:[%s2 + $0x78] sm:$0xf]
  %v467 = vld [vmem:[%s2 + $0x7c] sm:$0xf]
  %v468 = vld [vmem:[%s2 + $0x80] sm:$0xf]
  %v469 = vld [vmem:[%s2 + $0x84] sm:$0xf]
  %v478 = vunpack.c.l.b16 %v462
  %v479 = vunpack.c.l.b16 %v463
  %v480 = vunpack.c.l.b16 %v464
  %v481 = vunpack.c.l.b16 %v465
  %v482 = vunpack.c.l.b16 %v466
  %v483 = vunpack.c.l.b16 %v467
  %v484 = vunpack.c.l.b16 %v468
  %v485 = vunpack.c.l.b16 %v469
  %v486 = vpack.c.b16 %v479, %v478
  %v487 = vpack.c.b16 %v481, %v480
  %v488 = vpack.c.b16 %v483, %v482
  %v489 = vpack.c.b16 %v485, %v484
  %v495 = vsel %vm64, %v461, 0
  %497 = vmatpush.bf16.msra.mxu0 0
  %498 = vmatpush.bf16.msra.mxu0 0
  %499 = vmatpush.bf16.msra.mxu0 0
  %500 = vmatpush.bf16.msra.mxu0 0
  %501 = vmatpush.bf16.msra.mxu0 %v489
  %502 = vmatpush.bf16.msra.mxu0 %v488
  %503 = vmatpush.bf16.msra.mxu0 %v487
  %504 = vmatpush.bf16.msra.mxu0 %v486
  %505 = vmatmul.bf16.gmra.mxu0 %v495
  %v506 = vpop.f32.mrf.mxu0
  %v507 = vadd.f32 0.0, %v506
  %v508 = vpop.f32.mrf.mxu0
  %509 = vdwg.mxu0
  %v510 = vld [vmem:[%s3 + $0x8] sm:$0x1]
  %v511 = vld [vmem:[%s3 + $0x9] sm:$0x1]
  %v512 = vsel %vm295, %v507, 0.0
  %v513 = vrot.slane %v512, 4
  %v514 = vadd.f32 %v512, %v513
  %v515 = vrot.slane %v514, 2
  %v516 = vadd.f32 %v514, %v515
  %v517 = vrot.slane %v516, 1
  %v518 = vadd.f32 %v516, %v517
  %v519 = vmul.f32 %v518, 0.125
  %v520 = vmul.f32 %v507, %v507
  %v521 = vsel %vm295, %v520, 0.0
  %v522 = vrot.slane %v521, 4
  %v523 = vadd.f32 %v521, %v522
  %v524 = vrot.slane %v523, 2
  %v525 = vadd.f32 %v523, %v524
  %v526 = vrot.slane %v525, 1
  %v527 = vadd.f32 %v525, %v526
  %v528 = vmul.f32 %v527, 0.125
  %v529 = vmul.f32 %v519, %v519
  %v530 = vsub.f32 %v528, %v529
  %v531 = vmax.f32 %v530, 0.0
  %v532 = vadd.f32 %v531, 1e-05
  %v533 = vrsqrt.pop %v532
  %v534 = vmul.f32 %v533, %v532
  %v535 = vmul.f32 %v534, %v533
  %v536 = vmul.f32 0.5, %v535
  %v537 = vsub.f32 1.5, %v536
  %v538 = vmul.f32 %v533, %v537
  %vm539 = vweird.f32 %v532
  %vm540 = vweird.f32 %v533
  %vm541 = vmor %vm539, %vm540
  %v542 = vsel %vm541, %v533, %v538
  %v543 = vmul.f32 %v510, %v542
  %v544 = vmul.f32 %v519, %v543
  %v545 = vsub.f32 %v511, %v544
  %v546 = vperm.slane %v543, 0
  %v547 = vmul.f32 %v507, %v546
  %v548 = vperm.slane %v545, 0
  %v549 = vadd.f32 %v547, %v548
  %v550 = vmax.f32 %v549, 0.0
  %v551 = vld [vmem:[%s3 + $0xa] sm:$0x1]
  %v552 = vperm.slane %v551, 0
  %v553 = vmul.f32 %v550, %v552
  %v554 = vsel %vm295, %v553, 0.0
  %555 = vadd.xlane.f32.xlu0 %v554
  %v556 = vpop.xlane.xlu0 %555
  %v557 = vld [vmem:[%s3 + $0xb] sm:$0x1]
  %v558 = vperm.slane %v557, 0
  %v559 = vadd.f32 %v556, %v558
  %v560 = vxor.u32 %v559, 2147483648
  %v561 = vmul.f32 %v560, 1.442695
  %v562 = vpow.pop %v561
  %v563 = vadd.f32 %v562, 1.0
  %v564 = vrcp.pop %v563
  %v565 = vmul.f32 %v563, %v564
  %v566 = vsub.f32 1.0, %v565
  %v567 = vmul.f32 %v564, %v566
  %v568 = vadd.f32 %v564, %v567
  %vm569 = vweird.f32 %v563
  %vm570 = vweird.f32 %v564
  %vm571 = vmor %vm569, %vm570
  %v572 = vsel %vm571, %v564, %v568
  %v573 = vand.u32 2147483647, %v563
  %vm574 = vcmp.eq.f32.partialorder %v573, 8.507059e+37
  %v575 = vand.u32 %v563, 2147483648
  %v576 = vor.u32 1.1754944e-38, %v575
  %v577 = vsel %vm574, %v576, %v572
  %v578 = vmul.f32 1.0, %v577
  %vm579 = vcmask 7168
  %580 = vst.msk [vmem:[%s4] sm:$0xff] %vm579, %v578
  // Predicated region
  $region18: #{cardinality_classifier.1} parent=0 // pred_check
    _
  $region19: #{cardinality_classifier.1} parent=0 // pred_check_branch
    %582 = sbr.rel (0) target = $region21
  $region20: #{cardinality_classifier.1} parent=0 // pred_region
    _
  $region21: #{cardinality_classifier.1} parent=0 // pred_fallthru
    _
  // Predicated region
  $region22: #{cardinality_classifier.1} parent=0 // pred_check
    _
  $region23: #{cardinality_classifier.1} parent=0 // pred_check_branch
    %584 = sbr.rel (0) target = $region25
  $region24: #{cardinality_classifier.1} parent=0 // pred_region
    _
  $region25: #{cardinality_classifier.1} parent=0 // pred_fallthru
    _

</llo_original>
